<compile_context>
chip_gen: v5e
topology: v5e:2x2
jax: 0.10.0
libtpu: 0.0.40
codegen_flags: <defaults>
</compile_context>

<pallas_src>
import numpy as np
import jax
import jax.numpy as jnp
from jax.experimental import pallas as pl
from jax.experimental.pallas import tpu as pltpu


def _copy_kernel(x_ref, o_ref):
    # Pure data-movement hot path: one lane-dense VMEM tile in, same tile out.
    o_ref[...] = x_ref[...]


def _resolve_shape(shape, numel):
    """Resolve a torch-style shape (may contain a single -1)."""
    shape = list(shape)
    if -1 in shape:
        idx = shape.index(-1)
        known = 1
        for s in shape:
            if s != -1:
                known *= int(s)
        assert known > 0 and numel % known == 0, "cannot infer -1 dimension"
        shape[idx] = numel // known
    assert int(np.prod(shape)) == numel, "reshape size mismatch"
    return tuple(int(s) for s in shape)


_LANE = 128
_SUBLANE = 8
# Per-tile byte budget: double-buffered input + output => 4x this live in VMEM,
# which stays under v5e's 16 MiB default scoped VMEM and leaves ample headroom
# on v6e (128 MiB) and v7x (64 MiB physical / 32 MiB scoped).
_MAX_TILE_BYTES = 2 * 1024 * 1024


def _choose_lane_width(numel):
    """Largest lane-dense width (multiple of 128) dividing numel, preferring a
    slab with >= 8 rows so sublanes are full and output stores are unmasked."""
    best = None
    for w in (2048, 1024, 512, 256, 128):
        if numel % w == 0:
            if best is None:
                best = w
            if numel // w >= _SUBLANE:
                return w
    return best


def _pallas_copy_2d(flat):
    """Tiled HBM->VMEM->HBM copy of a 2-D lane-dense slab at the HBM roofline."""
    R, W = flat.shape
    itemsize = np.dtype(flat.dtype).itemsize

    # Row-tile: a multiple of 8 within the VMEM budget, or the full extent.
    max_rows = max(_SUBLANE,
                   (_MAX_TILE_BYTES // max(1, W * itemsize)) // _SUBLANE * _SUBLANE)
    if R <= max_rows:
        tr = R            # full extent (exempt from the 8-divisibility rule)
    else:
        tr = max_rows     # multiple of 8; trailing partial block is masked by Pallas

    grid = (pl.cdiv(R, tr),)
    return pl.pallas_call(
        _copy_kernel,
        out_shape=jax.ShapeDtypeStruct((R, W), flat.dtype),
        grid=grid,
        in_specs=[pl.BlockSpec((tr, W), lambda i: (i, 0))],
        out_specs=pl.BlockSpec((tr, W), lambda i: (i, 0)),
        compiler_params=pltpu.CompilerParams(
            # "parallel": independent copy tiles; shards across v7x's 2 TCs,
            # no-op on single-TC v5e/v6e.
            dimension_semantics=("parallel",),
        ),
        cost_estimate=pl.CostEstimate(
            flops=0,
            transcendentals=0,
            bytes_accessed=2 * R * W * itemsize,
        ),
    )(flat)


class Reshape:
    """Pallas-backed equivalent of the PyTorch Reshape(nn.Module): x.view(*shape).

    NOTE: for production use, `jnp.reshape(x, target)` alone is the correct
    (zero-cost, metadata-only) implementation; the Pallas copy below exists
    only because a kernel is mandated, and is tiled to run at the HBM roofline.
    """

    def __init__(self, *args):
        self.shape = args

    def __call__(self, x):
        numel = int(np.prod(x.shape)) if x.ndim > 0 else 1
        target = _resolve_shape(self.shape, numel)

        w = _choose_lane_width(numel)
        if w is None:
            # numel not a multiple of 128: small-input fallback, single
            # full-array block (correct via the full-extent exemption).
            flat = jnp.reshape(x, (1, numel))
        else:
            # Lane-dense slab independent of the batch dim (row-major order is
            # preserved, matching torch contiguous .view semantics).
            flat = jnp.reshape(x, (numel // w, w))

        out_flat = _pallas_copy_2d(flat)

        # Metadata-only step, exactly like torch .view() on contiguous data.
        return jnp.reshape(out_flat, target)


if __name__ == "__main__":
    key = jax.random.PRNGKey(0)
    # Small conv-feature-map shape (NCHW): B=2, C=4, H=W=16.
    x = jax.random.normal(key, (2, 4, 16, 16), dtype=jnp.float32)

    # Typical VAE usage: flatten conv features -> (B, C*H*W)
    reshape = Reshape(-1, 4 * 16 * 16)
    y = jax.block_until_ready(reshape(x))

    # Correctness check against the pure-JAX reference of x.view(-1, 1024).
    ref = jnp.reshape(x, (-1, 4 * 16 * 16))
    assert y.shape == (2, 1024), y.shape
    assert y.dtype == x.dtype
    np.testing.assert_array_equal(np.asarray(y), np.asarray(ref))

    print("KERNEL_OK")
</pallas_src>

<mosaic_0001>
module attributes {stable_mosaic.version = 11 : i64} {
  func.func @_copy_kernel(%arg0: i32, %arg1: memref<8x256xf32, #tpu.memory_space<vmem>>, %arg2: memref<8x256xf32, #tpu.memory_space<vmem>>) attributes {dimension_semantics = [#tpu.dimension_semantics<parallel>], iteration_bounds = array<i64: 1>, scalar_prefetch = 0 : i64, scratch_operands = 0 : i64, tpu.core_type = #tpu.core_type<tc>, window_params = [{transform_indices = @transform_0, window_bounds = array<i64: 8, 256>}, {transform_indices = @transform_1, window_bounds = array<i64: 8, 256>}]} {
    %c0 = arith.constant 0 : index
    %c0_0 = arith.constant 0 : index
    %0 = vector.load %arg1[%c0, %c0_0] : memref<8x256xf32, #tpu.memory_space<vmem>>, vector<8x256xf32>
    %c0_1 = arith.constant 0 : index
    %c0_2 = arith.constant 0 : index
    %1 = vector.load %arg2[%c0_1, %c0_2] : memref<8x256xf32, #tpu.memory_space<vmem>>, vector<8x256xf32>
    tpu.vector_store %arg2[%c0_1, %c0_2], %0 {strides = array<i32>} : memref<8x256xf32, #tpu.memory_space<vmem>>, vector<8x256xf32>,
    return
  }
  func.func @transform_0(%arg0: i32) -> (i32, i32) {
    %c0_i32 = arith.constant 0 : i32
    %c0_i32_0 = arith.constant 0 : i32
    return %arg0, %c0_i32 : i32, i32
  }
  func.func @transform_1(%arg0: i32) -> (i32, i32) {
    %c0_i32 = arith.constant 0 : i32
    %c0_i32_0 = arith.constant 0 : i32
    return %arg0, %c0_i32 : i32, i32
  }
}

</mosaic_0001>

<llo_original>
// kernel: tpu_custom_call.1
$region0: #{tpu_custom_call.1}
  #allocation0 [shape = 'u32[]', space=smem, size = 0x4, offset = 0x4, fixed_abs, tag = 'smem constant byte address 0x4 - core index']
  #allocation1 [shape = 'u32[72,128]{1,0:T(1,128)}', space=vmem, size = 0x9000, scoped, tag = 'internal scratch']
  %s0 = inlined_call_operand.hbm [shape: f32[8,256], index: 0, kind: input, shape index: {}]
  %s1 = inlined_call_operand.hbm [shape: f32[8,256], index: 1, kind: output, shape index: {}]
  %s2 = sld [smem:[#allocation0]]
  $region18: #{tpu_custom_call.1} parent=0
    _
  %s4 = ssub.s32 1, %s2
  %s5 = scalar_select 0, %s4, %s2
  $region1: #{tpu_custom_call.1} parent=0
    #allocation2 [shape = 'u8[8192]{0}', space=vmem, size = 0x2000, scoped, tag = 'input window, operand 0, single buffered']
    #allocation3 [shape = 's32[1]{0}', space=sflag, size = 0x4, scoped, tag = 'scoped memory for tpu_custom_call.1']
    #allocation4 [shape = 's32[1]{0}', space=sflag, size = 0x4, scoped, tag = 'scoped memory for tpu_custom_call.1']
    #allocation5 [shape = 'u8[8192]{0}', space=vmem, size = 0x2000, scoped, tag = 'output window, operand 0, single buffered']
    %6 = vsyncpa [#allocation3], 0
    %7 = vsyncpa [#allocation4], 0
    // Predicated region
    $region2: #{tpu_custom_call.1} parent=1 // pred_check
      _
    $region3: #{tpu_custom_call.1} parent=1 // pred_check_branch
      %9 = sbr.rel (0) target = $region5
    $region4: #{tpu_custom_call.1} parent=1 // pred_region
      %11 = vsyncadd [#allocation3], 0
      %s13 = sshll.u32 %s0, 4
      %s14 = int_to_ptr.hbm [resolvable:$true] %s13
      %s15 = sshll.u32 [#allocation2], 4
      %s16 = int_to_ptr.vmem [resolvable:$true] %s15
      %18 = dma.hbm_to_vmem [thread:$0]  %s14, 256, %s16, [#allocation3]
    $region5: #{tpu_custom_call.1} parent=1 // pred_fallthru
      _
    // Predicated region
    $region6: #{tpu_custom_call.1} parent=1 // pred_check
      _
    $region7: #{tpu_custom_call.1} parent=1 // pred_check_branch
      %20 = sbr.rel (0) target = $region9
    $region8: #{tpu_custom_call.1} parent=1 // pred_region
      %22 = dma.done [#allocation3], 256
    $region9: #{tpu_custom_call.1} parent=1 // pred_fallthru
      _
    %v23 = vld [vmem:[#allocation2] sm:$0xff]
    %v24 = vld [vmem:[#allocation2 + $0x8] sm:$0xff]
    %25 = vst [vmem:[#allocation5] sm:$0xff] %v23
    %26 = vst [vmem:[#allocation5 + $0x8] sm:$0xff] %v24
    // Predicated region
    $region10: #{tpu_custom_call.1} parent=1 // pred_check
      _
    $region11: #{tpu_custom_call.1} parent=1 // pred_check_branch
      %28 = sbr.rel (0) target = $region13
    $region12: #{tpu_custom_call.1} parent=1 // pred_region
      %30 = vsyncadd [#allocation4], 0
      %s32 = sshll.u32 [#allocation5], 4
      %s33 = int_to_ptr.vmem [resolvable:$true] %s32
      %s34 = sshll.u32 %s1, 4
      %s35 = int_to_ptr.hbm [resolvable:$true] %s34
      %37 = dma.vmem_to_hbm [thread:$0]  %s33, 256, %s35, [#allocation4]
    $region13: #{tpu_custom_call.1} parent=1 // pred_fallthru
      _
    // Predicated region
    $region14: #{tpu_custom_call.1} parent=1 // pred_check
      _
    $region15: #{tpu_custom_call.1} parent=1 // pred_check_branch
      %39 = sbr.rel (0) target = $region17
    $region16: #{tpu_custom_call.1} parent=1 // pred_region
      %41 = dma.done [#allocation4], 256
    $region17: #{tpu_custom_call.1} parent=1 // pred_fallthru
      _
    %42 = vsyncpa [#allocation3], 1
    %43 = vsyncpa [#allocation4], 1

</llo_original>
